<compile_context>
chip_gen: v6e
topology: v6e:2x2x1
jax: 0.10.0
libtpu: 0.0.40
codegen_flags: <defaults>
</compile_context>

<pallas_src>
import jax
import jax.numpy as jnp
from jax.experimental import pallas as pl
from jax.experimental.pallas import tpu as pltpu

_LANE = 128
_SUBLANE = 8
_MAX_BLOCK_ROWS = 2048  # 2048 * 128 * 4 B = 1 MiB per f32 block


def _pmodel_kernel(coef_ref, y0_ref, y1_ref, o_ref):
    # coef_ref: SMEM (2,) f32 -> [c1, c0]
    # y0_ref, y1_ref, o_ref: VMEM (block_rows, 128) f32, lane-dense.
    c1 = coef_ref[0]
    c0 = coef_ref[1]
    o_ref[...] = c1 * y1_ref[...] + c0 * y0_ref[...]


def _round_up(x, m):
    return (x + m - 1) // m * m


def pmodel_forward(z, dt, alpha=1.0, beta=1.0):
    """Pallas TPU forward of pModel. z: (N, 2); returns (N, 1) float32."""
    z = jnp.asarray(z, dtype=jnp.float32)
    n = z.shape[0]

    # Fold the scalar parameters once (done on host/XLA side, O(1) work):
    #   y_hat = y1 + (y1-y0) - dt*(beta*(y1-y0) + dt*alpha*y1)
    #         = (2 - dt*beta - dt^2*alpha) * y1 + (dt*beta - 1) * y0
    dt_f = jnp.float32(dt)
    alpha_f = jnp.float32(alpha)
    beta_f = jnp.float32(beta)
    c1 = jnp.float32(2.0) - dt_f * beta_f - dt_f * dt_f * alpha_f
    c0 = dt_f * beta_f - jnp.float32(1.0)
    coeffs = jnp.stack([c1, c0])  # (2,) f32, lives in SMEM inside the kernel

    # Lane-dense layout: batch on the 128-lane axis, rows a multiple of 8.
    rows = max(_SUBLANE, _round_up(pl.cdiv(n, _LANE), _SUBLANE))
    if rows > _MAX_BLOCK_ROWS:
        rows = _round_up(rows, _MAX_BLOCK_ROWS)
        block_rows = _MAX_BLOCK_ROWS
    else:
        block_rows = rows
    n_pad = rows * _LANE
    pad = n_pad - n

    y0 = jnp.pad(z[:, 0], (0, pad)).reshape(rows, _LANE)
    y1 = jnp.pad(z[:, 1], (0, pad)).reshape(rows, _LANE)

    out = pl.pallas_call(
        _pmodel_kernel,
        out_shape=jax.ShapeDtypeStruct((rows, _LANE), jnp.float32),
        grid=(rows // block_rows,),
        in_specs=[
            pl.BlockSpec(memory_space=pltpu.SMEM),                 # folded scalars
            pl.BlockSpec((block_rows, _LANE), lambda i: (i, 0)),   # y0 slab
            pl.BlockSpec((block_rows, _LANE), lambda i: (i, 0)),   # y1 slab
        ],
        out_specs=pl.BlockSpec((block_rows, _LANE), lambda i: (i, 0)),
        compiler_params=pltpu.CompilerParams(
            dimension_semantics=("parallel",),  # shard batch across TCs on v7x
        ),
    )(coeffs, y0, y1)

    # Drop padded tail and restore the (N, 1) shape of the PyTorch module.
    return out.reshape(-1)[:n].reshape(n, 1)


def _reference(z, dt, alpha=1.0, beta=1.0):
    z = jnp.asarray(z, dtype=jnp.float32)
    y0 = z[:, 0:1]
    y1 = z[:, 1:2]
    return y1 + (y1 - y0) - dt * (beta * (y1 - y0) + dt * alpha * y1)


if __name__ == "__main__":
    key = jax.random.PRNGKey(0)
    dt = 0.1
    # Deterministic parameters matching the PyTorch module __init__ (both 1.0).
    alpha = 1.0
    beta = 1.0

    # Small shape matching the module's forward: z is (N, 2).
    n = 8
    z = jax.random.normal(key, (n, 2), dtype=jnp.float32)
    y_hat = jax.block_until_ready(pmodel_forward(z, dt, alpha=alpha, beta=beta))
    ref = _reference(z, dt, alpha=alpha, beta=beta)
    assert y_hat.shape == (n, 1)
    assert jnp.allclose(y_hat, ref, atol=1e-5, rtol=1e-5)

    # A second, non-aligned batch size to exercise the pad/slice path.
    n2 = 300
    z2 = jax.random.normal(jax.random.PRNGKey(1), (n2, 2), dtype=jnp.float32)
    y_hat2 = jax.block_until_ready(pmodel_forward(z2, dt, alpha=alpha, beta=beta))
    ref2 = _reference(z2, dt, alpha=alpha, beta=beta)
    assert y_hat2.shape == (n2, 1)
    assert jnp.allclose(y_hat2, ref2, atol=1e-5, rtol=1e-5)

    print("KERNEL_OK")
</pallas_src>

<mosaic_0001>
module attributes {stable_mosaic.version = 11 : i64} {
  func.func @_pmodel_kernel(%arg0: i32, %arg1: memref<2xf32, #tpu.memory_space<smem>>, %arg2: memref<8x128xf32, #tpu.memory_space<vmem>>, %arg3: memref<8x128xf32, #tpu.memory_space<vmem>>, %arg4: memref<8x128xf32, #tpu.memory_space<vmem>>) attributes {dimension_semantics = [#tpu.dimension_semantics<parallel>], iteration_bounds = array<i64: 1>, scalar_prefetch = 0 : i64, scratch_operands = 0 : i64, tpu.core_type = #tpu.core_type<tc>, window_params = [{transform_indices = @transform_0, window_bounds = array<i64: 2>}, {transform_indices = @transform_1, window_bounds = array<i64: 8, 128>}, {transform_indices = @transform_2, window_bounds = array<i64: 8, 128>}, {transform_indices = @transform_3, window_bounds = array<i64: 8, 128>}]} {
    %c0 = arith.constant 0 : index
    %0 = memref.load %arg1[%c0] : memref<2xf32, #tpu.memory_space<smem>>
    %c1 = arith.constant 1 : index
    %1 = memref.load %arg1[%c1] : memref<2xf32, #tpu.memory_space<smem>>
    %c0_0 = arith.constant 0 : index
    %c0_1 = arith.constant 0 : index
    %2 = vector.load %arg3[%c0_0, %c0_1] : memref<8x128xf32, #tpu.memory_space<vmem>>, vector<8x128xf32>
    %3 = vector.broadcast %0 : f32 to vector<8x128xf32>
    %4 = arith.mulf %3, %2 : vector<8x128xf32>
    %c0_2 = arith.constant 0 : index
    %c0_3 = arith.constant 0 : index
    %5 = vector.load %arg2[%c0_2, %c0_3] : memref<8x128xf32, #tpu.memory_space<vmem>>, vector<8x128xf32>
    %6 = vector.broadcast %1 : f32 to vector<8x128xf32>
    %7 = arith.mulf %6, %5 : vector<8x128xf32>
    %8 = arith.addf %4, %7 : vector<8x128xf32>
    %c0_4 = arith.constant 0 : index
    %c0_5 = arith.constant 0 : index
    %9 = vector.load %arg4[%c0_4, %c0_5] : memref<8x128xf32, #tpu.memory_space<vmem>>, vector<8x128xf32>
    tpu.vector_store %arg4[%c0_4, %c0_5], %8 {strides = array<i32>} : memref<8x128xf32, #tpu.memory_space<vmem>>, vector<8x128xf32>,
    return
  }
  func.func @transform_0(%arg0: i32) -> i32 {
    %c0_i32 = arith.constant 0 : i32
    %c0_i32_0 = arith.constant 0 : i32
    return %c0_i32 : i32
  }
  func.func @transform_1(%arg0: i32) -> (i32, i32) {
    %c0_i32 = arith.constant 0 : i32
    %c0_i32_0 = arith.constant 0 : i32
    return %arg0, %c0_i32 : i32, i32
  }
  func.func @transform_2(%arg0: i32) -> (i32, i32) {
    %c0_i32 = arith.constant 0 : i32
    %c0_i32_0 = arith.constant 0 : i32
    return %arg0, %c0_i32 : i32, i32
  }
  func.func @transform_3(%arg0: i32) -> (i32, i32) {
    %c0_i32 = arith.constant 0 : i32
    %c0_i32_0 = arith.constant 0 : i32
    return %arg0, %c0_i32 : i32, i32
  }
}

</mosaic_0001>

<llo_original>
// kernel: tpu_custom_call.1
$region0: #{tpu_custom_call.1}
  #allocation0 [shape = 'u32[]', space=smem, size = 0x4, offset = 0x4, fixed_abs, tag = 'smem constant byte address 0x4 - core index']
  #allocation1 [shape = 'u32[144,128]{1,0:T(1,128)}', space=vmem, size = 0x12000, scoped, tag = 'internal scratch']
  %s0 = inlined_call_operand.hbm [shape: f32[2], index: 0, kind: input, shape index: {}]
  %s1 = inlined_call_operand.hbm [shape: f32[8,128], index: 1, kind: input, shape index: {}]
  %s2 = inlined_call_operand.hbm [shape: f32[8,128], index: 2, kind: input, shape index: {}]
  %s3 = inlined_call_operand.hbm [shape: f32[8,128], index: 3, kind: output, shape index: {}]
  %s4 = sld [smem:[#allocation0]]
  $region34: #{tpu_custom_call.1} parent=0
    _
  %s6 = ssub.s32 1, %s4
  %s7 = scalar_select 0, %s6, %s4
  $region1: #{tpu_custom_call.1} parent=0
    #allocation2 [shape = 'u8[512]{0}', space=smem, size = 0x200, scoped, tag = 'input window, operand 0, single buffered']
    #allocation3 [shape = 's32[1]{0}', space=sflag, size = 0x4, scoped, tag = 'scoped memory for tpu_custom_call.1']
    #allocation4 [shape = 's32[1]{0}', space=sflag, size = 0x4, scoped, tag = 'scoped memory for tpu_custom_call.1']
    #allocation5 [shape = 's32[1]{0}', space=sflag, size = 0x4, scoped, tag = 'scoped memory for tpu_custom_call.1']
    #allocation6 [shape = 'u8[4096]{0}', space=vmem, size = 0x1000, scoped, tag = 'input window, operand 1, single buffered']
    #allocation7 [shape = 'u8[4096]{0}', space=vmem, size = 0x1000, scoped, tag = 'input window, operand 2, single buffered']
    #allocation8 [shape = 's32[1]{0}', space=sflag, size = 0x4, scoped, tag = 'scoped memory for tpu_custom_call.1']
    #allocation9 [shape = 'u8[4096]{0}', space=vmem, size = 0x1000, scoped, tag = 'output window, operand 0, single buffered']
    %8 = vsyncpa [#allocation5], 0
    %9 = vsyncpa [#allocation3], 0
    %10 = vsyncpa [#allocation8], 0
    %11 = vsyncpa [#allocation4], 0
    // Predicated region
    $region2: #{tpu_custom_call.1} parent=1 // pred_check
      _
    $region3: #{tpu_custom_call.1} parent=1 // pred_check_branch
      %13 = sbr.rel (0) target = $region5
    $region4: #{tpu_custom_call.1} parent=1 // pred_region
      %s15 = ssub.s32 16, 16
      %16 = vsyncadd [#allocation5], %s15
      %19 = dma.hbm_to_smem %s0, 16, [#allocation2], [#allocation5]
    $region5: #{tpu_custom_call.1} parent=1 // pred_fallthru
      _
    // Predicated region
    $region6: #{tpu_custom_call.1} parent=1 // pred_check
      _
    $region7: #{tpu_custom_call.1} parent=1 // pred_check_branch
      %21 = sbr.rel (0) target = $region9
    $region8: #{tpu_custom_call.1} parent=1 // pred_region
      %s23 = ssub.s32 128, 128
      %24 = vsyncadd [#allocation3], %s23
      %s26 = sshll.u32 [#allocation6], 4
      %s27 = int_to_ptr.vmem [resolvable:$true] %s26
      %29 = dma.hbm_to_vmem [thread:$0]  %s1, 128, %s27, [#allocation3]
    $region9: #{tpu_custom_call.1} parent=1 // pred_fallthru
      _
    // Predicated region
    $region10: #{tpu_custom_call.1} parent=1 // pred_check
      _
    $region11: #{tpu_custom_call.1} parent=1 // pred_check_branch
      %31 = sbr.rel (0) target = $region13
    $region12: #{tpu_custom_call.1} parent=1 // pred_region
      %s33 = ssub.s32 128, 128
      %34 = vsyncadd [#allocation8], %s33
      %s36 = sshll.u32 [#allocation7], 4
      %s37 = int_to_ptr.vmem [resolvable:$true] %s36
      %39 = dma.hbm_to_vmem [thread:$0]  %s2, 128, %s37, [#allocation8]
    $region13: #{tpu_custom_call.1} parent=1 // pred_fallthru
      _
    // Predicated region
    $region14: #{tpu_custom_call.1} parent=1 // pred_check
      _
    $region15: #{tpu_custom_call.1} parent=1 // pred_check_branch
      %41 = sbr.rel (0) target = $region17
    $region16: #{tpu_custom_call.1} parent=1 // pred_region
      %42 = dma.done [#allocation5], 16
    $region17: #{tpu_custom_call.1} parent=1 // pred_fallthru
      _
    // Predicated region
    $region18: #{tpu_custom_call.1} parent=1 // pred_check
      _
    $region19: #{tpu_custom_call.1} parent=1 // pred_check_branch
      %44 = sbr.rel (0) target = $region21
    $region20: #{tpu_custom_call.1} parent=1 // pred_region
      %45 = dma.done [#allocation3], 128
    $region21: #{tpu_custom_call.1} parent=1 // pred_fallthru
      _
    // Predicated region
    $region22: #{tpu_custom_call.1} parent=1 // pred_check
      _
    $region23: #{tpu_custom_call.1} parent=1 // pred_check_branch
      %47 = sbr.rel (0) target = $region25
    $region24: #{tpu_custom_call.1} parent=1 // pred_region
      %48 = dma.done [#allocation8], 128
    $region25: #{tpu_custom_call.1} parent=1 // pred_fallthru
      _
    %49 = sfence
    %s50 = sld [smem:[#allocation2]]
    %s51 = sld [smem:[#allocation2 + $0x1]]
    %v52 = vld [vmem:[#allocation7] sm:$0xff]
    %v53 = vstv %s50
    %v54 = vmul.f32 %v53, %v52
    %v55 = vld [vmem:[#allocation6] sm:$0xff]
    %v56 = vstv %s51
    %v57 = vmul.f32 %v56, %v55
    %v58 = vadd.f32 %v54, %v57
    %59 = vst [vmem:[#allocation9] sm:$0xff] %v58
    // Predicated region
    $region26: #{tpu_custom_call.1} parent=1 // pred_check
      _
    $region27: #{tpu_custom_call.1} parent=1 // pred_check_branch
      %61 = sbr.rel (0) target = $region29
    $region28: #{tpu_custom_call.1} parent=1 // pred_region
      %s63 = ssub.s32 128, 128
      %64 = vsyncadd [#allocation4], %s63
      %s66 = sshll.u32 [#allocation9], 4
      %s67 = int_to_ptr.vmem [resolvable:$true] %s66
      %69 = dma.vmem_to_hbm [thread:$0]  %s67, 128, %s3, [#allocation4]
    $region29: #{tpu_custom_call.1} parent=1 // pred_fallthru
      _
    // Predicated region
    $region30: #{tpu_custom_call.1} parent=1 // pred_check
      _
    $region31: #{tpu_custom_call.1} parent=1 // pred_check_branch
      %71 = sbr.rel (0) target = $region33
    $region32: #{tpu_custom_call.1} parent=1 // pred_region
      %72 = dma.done [#allocation4], 128
    $region33: #{tpu_custom_call.1} parent=1 // pred_fallthru
      _
    %73 = vsyncpa [#allocation3], 1
    %74 = vsyncpa [#allocation8], 1
    %75 = vsyncpa [#allocation4], 1
    %76 = vsyncpa [#allocation5], 1

</llo_original>
